<compile_context>
chip_gen: v6e
topology: v6e:2x2x1
jax: 0.10.0
libtpu: 0.0.40
codegen_flags: <defaults>
</compile_context>

<pallas_src>
import functools

import jax
import jax.numpy as jnp
from jax.experimental import pallas as pl
from jax.experimental.pallas import tpu as pltpu

EPS = 1e-5
LANE = 128          # lane width: pad Cout up to this for lane-dense stores
ROW_ALIGN = 16      # row-tile alignment (safe sublane multiple for f32 & bf16)
DEFAULT_TM = 512    # im2col rows per grid step (~85% of HBM roofline in sweeps)


def _round_up(x, m):
    return ((x + m - 1) // m) * m


# ----------------------------------------------------------------------------
# Pallas kernels: one matmul + fused BN/bias (+ residual / + shortcut conv) + ReLU
# ----------------------------------------------------------------------------
def _conv_kernel(p_ref, w_ref, scale_ref, shift_ref, o_ref, *, relu):
    acc = jnp.dot(p_ref[...], w_ref[...], preferred_element_type=jnp.float32)
    out = acc * scale_ref[...] + shift_ref[...]          # bias folded into shift
    if relu:
        out = jnp.maximum(out, 0.0)
    o_ref[...] = out


def _conv_res_kernel(p_ref, w_ref, scale_ref, shift_ref, res_ref, o_ref):
    acc = jnp.dot(p_ref[...], w_ref[...], preferred_element_type=jnp.float32)
    out = acc * scale_ref[...] + shift_ref[...] + res_ref[...]
    o_ref[...] = jnp.maximum(out, 0.0)


def _conv_scconv_kernel(p_ref, w_ref, scale_ref, shift_ref,
                        scp_ref, scw_ref, sc_scale_ref, sc_shift_ref, o_ref):
    # main conv2 + bn2, plus fused 1x1 shortcut conv + its bn, residual add, ReLU
    acc = jnp.dot(p_ref[...], w_ref[...], preferred_element_type=jnp.float32)
    sc = jnp.dot(scp_ref[...], scw_ref[...], preferred_element_type=jnp.float32)
    out = (acc * scale_ref[...] + shift_ref[...]) + \
          (sc * sc_scale_ref[...] + sc_shift_ref[...])
    o_ref[...] = jnp.maximum(out, 0.0)


# ----------------------------------------------------------------------------
# JAX glue: im2col, BN folding, pallas_call wrapper
# ----------------------------------------------------------------------------
def _im2col(x_nhwc, ksize, stride, padding):
    """Returns (M, KK*Cin) patches (feature order [kh][kw][cin]) and out shape."""
    B, H, W, C = x_nhwc.shape
    xp = jnp.pad(x_nhwc, ((0, 0), (padding, padding), (padding, padding), (0, 0)))
    Hout = (H + 2 * padding - ksize) // stride + 1
    Wout = (W + 2 * padding - ksize) // stride + 1
    taps = []
    for kh in range(ksize):
        for kw in range(ksize):
            t = jax.lax.slice(
                xp,
                (0, kh, kw, 0),
                (B, kh + (Hout - 1) * stride + 1, kw + (Wout - 1) * stride + 1, C),
                (1, stride, stride, 1),
            )
            taps.append(t)
    p = jnp.concatenate(taps, axis=-1)                   # (B,Hout,Wout,KK*C)
    return p.reshape(B * Hout * Wout, ksize * ksize * C), (B, Hout, Wout)


def _fold_bn(bn, bias, cout_p):
    """Fold conv bias into the eval-mode BN affine: y = scale*conv + shift."""
    gamma, beta, mean, var = bn
    scale = gamma / jnp.sqrt(var + EPS)
    b = bias if bias is not None else jnp.zeros_like(beta)
    shift = (b - mean) * scale + beta
    pad = cout_p - scale.shape[0]
    scale = jnp.pad(scale, (0, pad)).reshape(1, cout_p).astype(jnp.float32)
    shift = jnp.pad(shift, (0, pad)).reshape(1, cout_p).astype(jnp.float32)
    return scale, shift


def conv_bn_act(x_nhwc, w_hwio, bias, bn, *, stride, padding, relu=True,
                residual=None, shortcut=None, tm=DEFAULT_TM):
    """Fused conv + BN(eval) [+ identity residual | + fused 1x1 shortcut] [+ ReLU]."""
    kh, kw, cin, cout = w_hwio.shape
    patches, (B, Hout, Wout) = _im2col(x_nhwc, kh, stride, padding)
    M, K = patches.shape
    cout_p = _round_up(cout, LANE)                       # lane-dense output

    # Row tiling: tm multiple of 16, pad M up to a multiple of tm.
    tm = min(tm, _round_up(M, ROW_ALIGN))
    Mp = _round_up(M, tm)
    if Mp != M:
        patches = jnp.pad(patches, ((0, Mp - M), (0, 0)))
    patches = patches.astype(jnp.bfloat16)

    w2 = jnp.pad(w_hwio.reshape(K, cout), ((0, 0), (0, cout_p - cout)))
    w2 = w2.astype(jnp.bfloat16)
    scale2, shift2 = _fold_bn(bn, bias, cout_p)

    args = [patches, w2, scale2, shift2]
    in_specs = [
        pl.BlockSpec((tm, K), lambda i: (i, 0)),
        pl.BlockSpec((K, cout_p), lambda i: (0, 0)),
        pl.BlockSpec((1, cout_p), lambda i: (0, 0)),
        pl.BlockSpec((1, cout_p), lambda i: (0, 0)),
    ]

    if residual is not None:
        # identity shortcut: residual is NHWC with matching spatial/channels
        res = residual.reshape(M, cout).astype(jnp.float32)
        res = jnp.pad(res, ((0, Mp - M), (0, cout_p - cout)))
        args.append(res)
        in_specs.append(pl.BlockSpec((tm, cout_p), lambda i: (i, 0)))
        kern = _conv_res_kernel
    elif shortcut is not None:
        # downsampling shortcut: fuse the 1x1 strided conv + its BN
        sc_x, sc_stride, sc_w, sc_bn = shortcut
        scp = sc_x[:, ::sc_stride, ::sc_stride, :]
        cin_sc = scp.shape[-1]
        scp = scp.reshape(M, cin_sc)
        if Mp != M:
            scp = jnp.pad(scp, ((0, Mp - M), (0, 0)))
        scp = scp.astype(jnp.bfloat16)
        scw = jnp.pad(sc_w.reshape(cin_sc, cout), ((0, 0), (0, cout_p - cout)))
        scw = scw.astype(jnp.bfloat16)
        sc_scale, sc_shift = _fold_bn(sc_bn, None, cout_p)
        args += [scp, scw, sc_scale, sc_shift]
        in_specs += [
            pl.BlockSpec((tm, cin_sc), lambda i: (i, 0)),
            pl.BlockSpec((cin_sc, cout_p), lambda i: (0, 0)),
            pl.BlockSpec((1, cout_p), lambda i: (0, 0)),
            pl.BlockSpec((1, cout_p), lambda i: (0, 0)),
        ]
        kern = _conv_scconv_kernel
    else:
        kern = functools.partial(_conv_kernel, relu=relu)

    out = pl.pallas_call(
        kern,
        out_shape=jax.ShapeDtypeStruct((Mp, cout_p), jnp.float32),
        grid=(Mp // tm,),
        in_specs=in_specs,
        out_specs=pl.BlockSpec((tm, cout_p), lambda i: (i, 0)),
        compiler_params=pltpu.CompilerParams(
            dimension_semantics=("parallel",),          # split rows across TCs (v7x)
            vmem_limit_bytes=32 * 1024 * 1024,          # safe on v5e/v6e/v7x
        ),
    )(*args)
    return out[:M, :cout].reshape(B, Hout, Wout, cout)


# ----------------------------------------------------------------------------
# Module structure: ResidualBlock / ResNetBody
# ----------------------------------------------------------------------------
def residual_block(x, p, stride):
    cin = x.shape[-1]
    cout = p["conv1_w"].shape[-1]
    out = conv_bn_act(x, p["conv1_w"], p["conv1_b"], p["bn1"],
                      stride=stride, padding=1, relu=True)
    if stride != 1 or cin != cout:
        # conv2 + bn2 + (1x1 shortcut conv + bn) + add + ReLU, one kernel
        out = conv_bn_act(out, p["conv2_w"], p["conv2_b"], p["bn2"],
                          stride=1, padding=1, relu=True,
                          shortcut=(x, stride, p["sc_w"], p["sc_bn"]))
    else:
        # conv2 + bn2 + identity residual + ReLU, one kernel
        out = conv_bn_act(out, p["conv2_w"], p["conv2_b"], p["bn2"],
                          stride=1, padding=1, relu=True, residual=x)
    return out


def resnet_body_forward(x_nchw, params):
    x = jnp.transpose(x_nchw, (0, 2, 3, 1))  # NCHW -> NHWC
    x = conv_bn_act(x, params["conv1_w"], None, params["bn1"],
                    stride=1, padding=1, relu=True)
    for block in params["blocks"]:
        for rb_params, stride in block:
            x = residual_block(x, rb_params, stride)
    return jnp.transpose(x, (0, 3, 1, 2))    # back to NCHW


# ----------------------------------------------------------------------------
# Deterministic synthetic parameter init (matching the PyTorch __init__ shapes)
# ----------------------------------------------------------------------------
def _init_conv(key, cin, cout, k):
    fan_in = cin * k * k
    return (jax.random.normal(key, (k, k, cin, cout), jnp.float32)
            * (1.0 / jnp.sqrt(jnp.float32(fan_in))))


def _init_bias(key, cout):
    return jax.random.normal(key, (cout,), jnp.float32) * 0.05


def _init_bn(key, c):
    k1, k2, k3, k4 = jax.random.split(key, 4)
    gamma = jax.random.uniform(k1, (c,), jnp.float32, 0.5, 1.5)
    beta = jax.random.normal(k2, (c,), jnp.float32) * 0.1
    mean = jax.random.normal(k3, (c,), jnp.float32) * 0.1
    var = jax.random.uniform(k4, (c,), jnp.float32, 0.5, 1.5)
    return (gamma, beta, mean, var)


def _init_residual_block(key, cin, cout, stride):
    ks = jax.random.split(key, 7)
    p = {
        "conv1_w": _init_conv(ks[0], cin, cout, 3),
        "conv1_b": _init_bias(ks[1], cout),
        "bn1": _init_bn(ks[2], cout),
        "conv2_w": _init_conv(ks[3], cout, cout, 3),
        "conv2_b": _init_bias(ks[4], cout),
        "bn2": _init_bn(ks[5], cout),
    }
    if stride != 1 or cin != cout:
        ksc = jax.random.split(ks[6], 2)
        p["sc_w"] = _init_conv(ksc[0], cin, cout, 1)
        p["sc_bn"] = _init_bn(ksc[1], cout)
    return p


def init_resnet_body(key, filter_sizes=(64, 32, 16, 16)):
    ks = jax.random.split(key, 10)
    params = {
        "conv1_w": _init_conv(ks[0], 1, 64, 3),   # bias=False in the stem conv
        "bn1": _init_bn(ks[1], 64),
    }
    blocks = []
    in_c = 64
    strides = (1, 2, 2, 2)
    ki = 2
    for out_c, stride in zip(filter_sizes, strides):
        rb1 = _init_residual_block(ks[ki], in_c, out_c, stride)
        rb2 = _init_residual_block(ks[ki + 1], out_c, out_c, 1)
        blocks.append([(rb1, stride), (rb2, 1)])
        in_c = out_c
        ki += 2
    params["blocks"] = blocks
    return params


# ----------------------------------------------------------------------------
if __name__ == "__main__":
    key = jax.random.PRNGKey(0)
    kx, kp = jax.random.split(key)
    # Audio-spectrogram-style input: NCHW, 1 input channel.
    x = jax.random.normal(kx, (2, 1, 16, 16), jnp.float32)
    params = init_resnet_body(kp)

    y = resnet_body_forward(x, params)
    y = jax.block_until_ready(y)
    assert y.shape == (2, 16, 2, 2), y.shape  # 16x16 -> /2 /2 /2 spatial, C=16
    print("KERNEL_OK")
</pallas_src>

<mosaic_0001>
module attributes {stable_mosaic.version = 11 : i64} {
  func.func @_conv_kernel(%arg0: i32, %arg1: memref<512x9xbf16, #tpu.memory_space<vmem>>, %arg2: memref<9x128xbf16, #tpu.memory_space<vmem>>, %arg3: memref<1x128xf32, #tpu.memory_space<vmem>>, %arg4: memref<1x128xf32, #tpu.memory_space<vmem>>, %arg5: memref<512x128xf32, #tpu.memory_space<vmem>>) attributes {dimension_semantics = [#tpu.dimension_semantics<parallel>], iteration_bounds = array<i64: 1>, scalar_prefetch = 0 : i64, scratch_operands = 0 : i64, tpu.core_type = #tpu.core_type<tc>, window_params = [{transform_indices = @transform_0, window_bounds = array<i64: 512, 9>}, {pipeline_mode = #tpu.pipeline_mode<synchronous>, transform_indices = @transform_1, window_bounds = array<i64: 9, 128>}, {pipeline_mode = #tpu.pipeline_mode<synchronous>, transform_indices = @transform_2, window_bounds = array<i64: 1, 128>}, {pipeline_mode = #tpu.pipeline_mode<synchronous>, transform_indices = @transform_3, window_bounds = array<i64: 1, 128>}, {transform_indices = @transform_4, window_bounds = array<i64: 512, 128>}]} {
    %c0 = arith.constant 0 : index
    %c0_0 = arith.constant 0 : index
    %0 = vector.load %arg1[%c0, %c0_0] : memref<512x9xbf16, #tpu.memory_space<vmem>>, vector<512x9xbf16>
    %c0_1 = arith.constant 0 : index
    %c0_2 = arith.constant 0 : index
    %1 = vector.load %arg2[%c0_1, %c0_2] : memref<9x128xbf16, #tpu.memory_space<vmem>>, vector<9x128xbf16>
    %cst = arith.constant dense<0.000000e+00> : vector<512x128xf32>
    %2 = tpu.matmul %0, %1, %cst {dimension_numbers = #tpu.dot_dimension_numbers<[1], [0], [0], [1], [0, 0, 1, 1], [], []>} : vector<512x9xbf16>, vector<9x128xbf16>, vector<512x128xf32> -> vector<512x128xf32>
    %c0_3 = arith.constant 0 : index
    %c0_4 = arith.constant 0 : index
    %3 = vector.load %arg3[%c0_3, %c0_4] : memref<1x128xf32, #tpu.memory_space<vmem>>, vector<1x128xf32>
    %4 = vector.broadcast %3 : vector<1x128xf32> to vector<512x128xf32>
    %5 = arith.mulf %2, %4 : vector<512x128xf32>
    %c0_5 = arith.constant 0 : index
    %c0_6 = arith.constant 0 : index
    %6 = vector.load %arg4[%c0_5, %c0_6] : memref<1x128xf32, #tpu.memory_space<vmem>>, vector<1x128xf32>
    %7 = vector.broadcast %6 : vector<1x128xf32> to vector<512x128xf32>
    %8 = arith.addf %5, %7 : vector<512x128xf32>
    %cst_7 = arith.constant 0.000000e+00 : f32
    %9 = vector.broadcast %cst_7 : f32 to vector<512x128xf32>
    %10 = arith.maximumf %8, %9 : vector<512x128xf32>
    %c0_8 = arith.constant 0 : index
    %c0_9 = arith.constant 0 : index
    %11 = vector.load %arg5[%c0_8, %c0_9] : memref<512x128xf32, #tpu.memory_space<vmem>>, vector<512x128xf32>
    tpu.vector_store %arg5[%c0_8, %c0_9], %10 {strides = array<i32>} : memref<512x128xf32, #tpu.memory_space<vmem>>, vector<512x128xf32>,
    return
  }
  func.func @transform_0(%arg0: i32) -> (i32, i32) {
    %c0_i32 = arith.constant 0 : i32
    %c0_i32_0 = arith.constant 0 : i32
    return %arg0, %c0_i32 : i32, i32
  }
  func.func @transform_1(%arg0: i32) -> (i32, i32) {
    %c0_i32 = arith.constant 0 : i32
    %c0_i32_0 = arith.constant 0 : i32
    %c0_i32_1 = arith.constant 0 : i32
    return %c0_i32, %c0_i32_0 : i32, i32
  }
  func.func @transform_2(%arg0: i32) -> (i32, i32) {
    %c0_i32 = arith.constant 0 : i32
    %c0_i32_0 = arith.constant 0 : i32
    %c0_i32_1 = arith.constant 0 : i32
    return %c0_i32, %c0_i32_0 : i32, i32
  }
  func.func @transform_3(%arg0: i32) -> (i32, i32) {
    %c0_i32 = arith.constant 0 : i32
    %c0_i32_0 = arith.constant 0 : i32
    %c0_i32_1 = arith.constant 0 : i32
    return %c0_i32, %c0_i32_0 : i32, i32
  }
  func.func @transform_4(%arg0: i32) -> (i32, i32) {
    %c0_i32 = arith.constant 0 : i32
    %c0_i32_0 = arith.constant 0 : i32
    return %arg0, %c0_i32 : i32, i32
  }
}

</mosaic_0001>

<llo_original>
// kernel: tpu_custom_call.1
$region0: #{tpu_custom_call.1}
  #allocation0 [shape = 'u32[]', space=smem, size = 0x4, offset = 0x4, fixed_abs, tag = 'smem constant byte address 0x4 - core index']
  #allocation1 [shape = 'u32[144,128]{1,0:T(1,128)}', space=vmem, size = 0x12000, scoped, tag = 'internal scratch']
  %s0 = inlined_call_operand.vmem [shape: bf16[512,9], index: 0, kind: input, shape index: {}]
  %s1 = inlined_call_operand.vmem [shape: bf16[9,128], index: 1, kind: input, shape index: {}]
  %s2 = inlined_call_operand.vmem [shape: f32[1,128], index: 2, kind: input, shape index: {}]
  %s3 = inlined_call_operand.vmem [shape: f32[1,128], index: 3, kind: input, shape index: {}]
  %s4 = inlined_call_operand.hbm [shape: f32[512,128], index: 4, kind: output, shape index: {}]
  %s5 = sld [smem:[#allocation0]]
  $region26: #{tpu_custom_call.1} parent=0
    _
  %s7 = ssub.s32 1, %s5
  %s8 = scalar_select 0, %s7, %s5
  $region1: #{tpu_custom_call.1} parent=0
    #allocation2 [shape = 'u8[262144]{0}', space=vmem, size = 0x40000, scoped, tag = 'output window, operand 0, single buffered']
    #allocation3 [shape = 's32[1]{0}', space=sflag, size = 0x4, scoped, tag = 'scoped memory for tpu_custom_call.1']
    %9 = vsyncpa [#allocation3], 0
    // Predicated region
    $region2: #{tpu_custom_call.1} parent=1 // pred_check
      _
    $region3: #{tpu_custom_call.1} parent=1 // pred_check_branch
      %11 = sbr.rel (0) target = $region5
    $region4: #{tpu_custom_call.1} parent=1 // pred_region
      _
    $region5: #{tpu_custom_call.1} parent=1 // pred_fallthru
      _
    // Predicated region
    $region6: #{tpu_custom_call.1} parent=1 // pred_check
      _
    $region7: #{tpu_custom_call.1} parent=1 // pred_check_branch
      %13 = sbr.rel (0) target = $region9
    $region8: #{tpu_custom_call.1} parent=1 // pred_region
      _
    $region9: #{tpu_custom_call.1} parent=1 // pred_fallthru
      _
    // Predicated region
    $region10: #{tpu_custom_call.1} parent=1 // pred_check
      _
    $region11: #{tpu_custom_call.1} parent=1 // pred_check_branch
      %15 = sbr.rel (0) target = $region13
    $region12: #{tpu_custom_call.1} parent=1 // pred_region
      _
    $region13: #{tpu_custom_call.1} parent=1 // pred_fallthru
      _
    // Predicated region
    $region14: #{tpu_custom_call.1} parent=1 // pred_check
      _
    $region15: #{tpu_custom_call.1} parent=1 // pred_check_branch
      %17 = sbr.rel (0) target = $region17
    $region16: #{tpu_custom_call.1} parent=1 // pred_region
      _
    $region17: #{tpu_custom_call.1} parent=1 // pred_fallthru
      _
    %v19 = vld [vmem:[%s0] sm:$0xf]
    %v20 = vld [vmem:[%s0 + $0x4] sm:$0xf]
    %v21 = vld [vmem:[%s0 + $0x8] sm:$0xf]
    %v22 = vld [vmem:[%s0 + $0xc] sm:$0xf]
    %v23 = vld [vmem:[%s0 + $0x10] sm:$0xf]
    %v24 = vld [vmem:[%s0 + $0x14] sm:$0xf]
    %v25 = vld [vmem:[%s0 + $0x18] sm:$0xf]
    %v26 = vld [vmem:[%s0 + $0x1c] sm:$0xf]
    %v27 = vld [vmem:[%s0 + $0x20] sm:$0xf]
    %v28 = vld [vmem:[%s0 + $0x24] sm:$0xf]
    %v29 = vld [vmem:[%s0 + $0x28] sm:$0xf]
    %v30 = vld [vmem:[%s0 + $0x2c] sm:$0xf]
    %v31 = vld [vmem:[%s0 + $0x30] sm:$0xf]
    %v32 = vld [vmem:[%s0 + $0x34] sm:$0xf]
    %v33 = vld [vmem:[%s0 + $0x38] sm:$0xf]
    %v34 = vld [vmem:[%s0 + $0x3c] sm:$0xf]
    %v35 = vld [vmem:[%s0 + $0x40] sm:$0xf]
    %v36 = vld [vmem:[%s0 + $0x44] sm:$0xf]
    %v37 = vld [vmem:[%s0 + $0x48] sm:$0xf]
    %v38 = vld [vmem:[%s0 + $0x4c] sm:$0xf]
    %v39 = vld [vmem:[%s0 + $0x50] sm:$0xf]
    %v40 = vld [vmem:[%s0 + $0x54] sm:$0xf]
    %v41 = vld [vmem:[%s0 + $0x58] sm:$0xf]
    %v42 = vld [vmem:[%s0 + $0x5c] sm:$0xf]
    %v43 = vld [vmem:[%s0 + $0x60] sm:$0xf]
    %v44 = vld [vmem:[%s0 + $0x64] sm:$0xf]
    %v45 = vld [vmem:[%s0 + $0x68] sm:$0xf]
    %v46 = vld [vmem:[%s0 + $0x6c] sm:$0xf]
    %v47 = vld [vmem:[%s0 + $0x70] sm:$0xf]
    %v48 = vld [vmem:[%s0 + $0x74] sm:$0xf]
    %v49 = vld [vmem:[%s0 + $0x78] sm:$0xf]
    %v50 = vld [vmem:[%s0 + $0x7c] sm:$0xf]
    %v51 = vld [vmem:[%s0 + $0x80] sm:$0xf]
    %v52 = vld [vmem:[%s0 + $0x84] sm:$0xf]
    %v53 = vld [vmem:[%s0 + $0x88] sm:$0xf]
    %v54 = vld [vmem:[%s0 + $0x8c] sm:$0xf]
    %v55 = vld [vmem:[%s0 + $0x90] sm:$0xf]
    %v56 = vld [vmem:[%s0 + $0x94] sm:$0xf]
    %v57 = vld [vmem:[%s0 + $0x98] sm:$0xf]
    %v58 = vld [vmem:[%s0 + $0x9c] sm:$0xf]
    %v59 = vld [vmem:[%s0 + $0xa0] sm:$0xf]
    %v60 = vld [vmem:[%s0 + $0xa4] sm:$0xf]
    %v61 = vld [vmem:[%s0 + $0xa8] sm:$0xf]
    %v62 = vld [vmem:[%s0 + $0xac] sm:$0xf]
    %v63 = vld [vmem:[%s0 + $0xb0] sm:$0xf]
    %v64 = vld [vmem:[%s0 + $0xb4] sm:$0xf]
    %v65 = vld [vmem:[%s0 + $0xb8] sm:$0xf]
    %v66 = vld [vmem:[%s0 + $0xbc] sm:$0xf]
    %v67 = vld [vmem:[%s0 + $0xc0] sm:$0xf]
    %v68 = vld [vmem:[%s0 + $0xc4] sm:$0xf]
    %v69 = vld [vmem:[%s0 + $0xc8] sm:$0xf]
    %v70 = vld [vmem:[%s0 + $0xcc] sm:$0xf]
    %v71 = vld [vmem:[%s0 + $0xd0] sm:$0xf]
    %v72 = vld [vmem:[%s0 + $0xd4] sm:$0xf]
    %v73 = vld [vmem:[%s0 + $0xd8] sm:$0xf]
    %v74 = vld [vmem:[%s0 + $0xdc] sm:$0xf]
    %v75 = vld [vmem:[%s0 + $0xe0] sm:$0xf]
    %v76 = vld [vmem:[%s0 + $0xe4] sm:$0xf]
    %v77 = vld [vmem:[%s0 + $0xe8] sm:$0xf]
    %v78 = vld [vmem:[%s0 + $0xec] sm:$0xf]
    %v79 = vld [vmem:[%s0 + $0xf0] sm:$0xf]
    %v80 = vld [vmem:[%s0 + $0xf4] sm:$0xf]
    %v81 = vld [vmem:[%s0 + $0xf8] sm:$0xf]
    %v82 = vld [vmem:[%s0 + $0xfc] sm:$0xf]
    %v83 = vld [vmem:[%s1] sm:$0xf]
    %v84 = vld [vmem:[%s1 + $0x4] sm:$0x1]
    %v149 = vunpack.c.l.b16 %v19
    %v150 = vunpack.c.l.b16 %v20
    %v151 = vunpack.c.l.b16 %v21
    %v152 = vunpack.c.l.b16 %v22
    %v153 = vunpack.c.l.b16 %v23
    %v154 = vunpack.c.l.b16 %v24
    %v155 = vunpack.c.l.b16 %v25
    %v156 = vunpack.c.l.b16 %v26
    %v157 = vunpack.c.l.b16 %v27
    %v158 = vunpack.c.l.b16 %v28
    %v159 = vunpack.c.l.b16 %v29
    %v160 = vunpack.c.l.b16 %v30
    %v161 = vunpack.c.l.b16 %v31
    %v162 = vunpack.c.l.b16 %v32
    %v163 = vunpack.c.l.b16 %v33
    %v164 = vunpack.c.l.b16 %v34
    %v165 = vunpack.c.l.b16 %v35
    %v166 = vunpack.c.l.b16 %v36
    %v167 = vunpack.c.l.b16 %v37
    %v168 = vunpack.c.l.b16 %v38
    %v169 = vunpack.c.l.b16 %v39
    %v170 = vunpack.c.l.b16 %v40
    %v171 = vunpack.c.l.b16 %v41
    %v172 = vunpack.c.l.b16 %v42
    %v173 = vunpack.c.l.b16 %v43
    %v174 = vunpack.c.l.b16 %v44
    %v175 = vunpack.c.l.b16 %v45
    %v176 = vunpack.c.l.b16 %v46
    %v177 = vunpack.c.l.b16 %v47
    %v178 = vunpack.c.l.b16 %v48
    %v179 = vunpack.c.l.b16 %v49
    %v180 = vunpack.c.l.b16 %v50
    %v181 = vunpack.c.l.b16 %v51
    %v182 = vunpack.c.l.b16 %v52
    %v183 = vunpack.c.l.b16 %v53
    %v184 = vunpack.c.l.b16 %v54
    %v185 = vunpack.c.l.b16 %v55
    %v186 = vunpack.c.l.b16 %v56
    %v187 = vunpack.c.l.b16 %v57
    %v188 = vunpack.c.l.b16 %v58
    %v189 = vunpack.c.l.b16 %v59
    %v190 = vunpack.c.l.b16 %v60
    %v191 = vunpack.c.l.b16 %v61
    %v192 = vunpack.c.l.b16 %v62
    %v193 = vunpack.c.l.b16 %v63
    %v194 = vunpack.c.l.b16 %v64
    %v195 = vunpack.c.l.b16 %v65
    %v196 = vunpack.c.l.b16 %v66
    %v197 = vunpack.c.l.b16 %v67
    %v198 = vunpack.c.l.b16 %v68
    %v199 = vunpack.c.l.b16 %v69
    %v200 = vunpack.c.l.b16 %v70
    %v201 = vunpack.c.l.b16 %v71
    %v202 = vunpack.c.l.b16 %v72
    %v203 = vunpack.c.l.b16 %v73
    %v204 = vunpack.c.l.b16 %v74
    %v205 = vunpack.c.l.b16 %v75
    %v206 = vunpack.c.l.b16 %v76
    %v207 = vunpack.c.l.b16 %v77
    %v208 = vunpack.c.l.b16 %v78
    %v209 = vunpack.c.l.b16 %v79
    %v210 = vunpack.c.l.b16 %v80
    %v211 = vunpack.c.l.b16 %v81
    %v212 = vunpack.c.l.b16 %v82
    %v213 = vpack.c.b16 %v150, %v149
    %v214 = vpack.c.b16 %v152, %v151
    %v215 = vpack.c.b16 %v154, %v153
    %v216 = vpack.c.b16 %v156, %v155
    %v217 = vpack.c.b16 %v158, %v157
    %v218 = vpack.c.b16 %v160, %v159
    %v219 = vpack.c.b16 %v162, %v161
    %v220 = vpack.c.b16 %v164, %v163
    %v221 = vpack.c.b16 %v166, %v165
    %v222 = vpack.c.b16 %v168, %v167
    %v223 = vpack.c.b16 %v170, %v169
    %v224 = vpack.c.b16 %v172, %v171
    %v225 = vpack.c.b16 %v174, %v173
    %v226 = vpack.c.b16 %v176, %v175
    %v227 = vpack.c.b16 %v178, %v177
    %v228 = vpack.c.b16 %v180, %v179
    %v229 = vpack.c.b16 %v182, %v181
    %v230 = vpack.c.b16 %v184, %v183
    %v231 = vpack.c.b16 %v186, %v185
    %v232 = vpack.c.b16 %v188, %v187
    %v233 = vpack.c.b16 %v190, %v189
    %v234 = vpack.c.b16 %v192, %v191
    %v235 = vpack.c.b16 %v194, %v193
    %v236 = vpack.c.b16 %v196, %v195
    %v237 = vpack.c.b16 %v198, %v197
    %v238 = vpack.c.b16 %v200, %v199
    %v239 = vpack.c.b16 %v202, %v201
    %v240 = vpack.c.b16 %v204, %v203
    %v241 = vpack.c.b16 %v206, %v205
    %v242 = vpack.c.b16 %v208, %v207
    %v243 = vpack.c.b16 %v210, %v209
    %v244 = vpack.c.b16 %v212, %v211
    %v247 = vunpack.c.l.b16 %v83
    %v248 = vunpack.c.l.b16 %v84
    %v249 = vpack.c.b16 %v248, %v247
    %vm250 = vcmask 72704
    %v252 = vsel %vm250, %v213, 0
    %v255 = vsel %vm250, %v214, 0
    %v258 = vsel %vm250, %v215, 0
    %v261 = vsel %vm250, %v216, 0
    %v264 = vsel %vm250, %v217, 0
    %v267 = vsel %vm250, %v218, 0
    %v270 = vsel %vm250, %v219, 0
    %v273 = vsel %vm250, %v220, 0
    %v276 = vsel %vm250, %v221, 0
    %v279 = vsel %vm250, %v222, 0
    %v282 = vsel %vm250, %v223, 0
    %v285 = vsel %vm250, %v224, 0
    %v288 = vsel %vm250, %v225, 0
    %v291 = vsel %vm250, %v226, 0
    %v294 = vsel %vm250, %v227, 0
    %v297 = vsel %vm250, %v228, 0
    %v300 = vsel %vm250, %v229, 0
    %v303 = vsel %vm250, %v230, 0
    %v306 = vsel %vm250, %v231, 0
    %v309 = vsel %vm250, %v232, 0
    %v312 = vsel %vm250, %v233, 0
    %v315 = vsel %vm250, %v234, 0
    %v318 = vsel %vm250, %v235, 0
    %v321 = vsel %vm250, %v236, 0
    %v324 = vsel %vm250, %v237, 0
    %v327 = vsel %vm250, %v238, 0
    %v330 = vsel %vm250, %v239, 0
    %v333 = vsel %vm250, %v240, 0
    %v336 = vsel %vm250, %v241, 0
    %v339 = vsel %vm250, %v242, 0
    %v342 = vsel %vm250, %v243, 0
    %v345 = vsel %vm250, %v244, 0
    %vm347 = vcmask 1043456
    %vm348 = vcmask 1044480
    %v349 = vsel %vm347, 4294967295, 65535
    %v350 = vsel %vm348, %v349, 0
    %v352 = vand.u32 %v249, %v350
    %354 = vmatprep.subr.bf16.mxu0 0
    %355 = vmatpush1.bf16.msra.mxu0 0
    %356 = vmatprep.subr.bf16.mxu0 0
    %357 = vmatpush1.bf16.msra.mxu0 0
    %358 = vmatprep.subr.bf16.mxu0 0
    %359 = vmatpush1.bf16.msra.mxu0 0
    %360 = vmatprep.subr.bf16.mxu0 0
    %361 = vmatpush1.bf16.msra.mxu0 0
    %362 = vmatprep.subr.bf16.mxu0 0
    %363 = vmatpush1.bf16.msra.mxu0 0
    %364 = vmatprep.subr.bf16.mxu0 0
    %365 = vmatpush1.bf16.msra.mxu0 0
    %366 = vmatprep.subr.bf16.mxu0 0
    %367 = vmatpush1.bf16.msra.mxu0 0
    %368 = vmatprep.subr.bf16.mxu0 0
    %369 = vmatpush1.bf16.msra.mxu0 %v352
    %370 = vmatprep.subr.bf16.mxu0 0
    %371 = vmatpush2.bf16.msra.mxu0 0
    %372 = vmatprep.subr.bf16.mxu0 0
    %373 = vmatpush2.bf16.msra.mxu0 0
    %374 = vmatprep.subr.bf16.mxu0 0
    %375 = vmatpush2.bf16.msra.mxu0 0
    %376 = vmatprep.subr.bf16.mxu0 0
    %377 = vmatpush2.bf16.msra.mxu0 0
    %378 = vmatprep.subr.bf16.mxu0 0
    %379 = vmatpush2.bf16.msra.mxu0 0
    %380 = vmatprep.subr.bf16.mxu0 0
    %381 = vmatpush2.bf16.msra.mxu0 0
    %382 = vmatprep.subr.bf16.mxu0 0
    %383 = vmatpush2.bf16.msra.mxu0 0
    %384 = vmatprep.subr.bf16.mxu0 0
    %385 = vmatpush2.bf16.msra.mxu0 0
    %386 = vmatprep.mubr.bf16.mxu0 0
    %387 = vmatmul.mubr.bf16.gmra.mxu0 %v252
    %v388 = vpop.f32.mrf.mxu0
    %v389 = vadd.f32 0.0, %v388
    %v390 = vpop.f32.mrf.mxu0
    %v391 = vpop.f32.mrf.mxu0
    %v392 = vadd.f32 0.0, %v391
    %v393 = vpop.f32.mrf.mxu0
    %394 = vmatprep.mubr.bf16.mxu0 0
    %395 = vmatmul.mubr.bf16.gmra.mxu0 %v255
    %v396 = vpop.f32.mrf.mxu0
    %v397 = vadd.f32 0.0, %v396
    %v398 = vpop.f32.mrf.mxu0
    %v399 = vpop.f32.mrf.mxu0
    %v400 = vadd.f32 0.0, %v399
    %v401 = vpop.f32.mrf.mxu0
    %402 = vmatprep.mubr.bf16.mxu0 0
    %403 = vmatmul.mubr.bf16.gmra.mxu0 %v258
    %v404 = vpop.f32.mrf.mxu0
    %v405 = vadd.f32 0.0, %v404
    %v406 = vpop.f32.mrf.mxu0
    %v407 = vpop.f32.mrf.mxu0
    %v408 = vadd.f32 0.0, %v407
    %v409 = vpop.f32.mrf.mxu0
    %410 = vmatprep.mubr.bf16.mxu0 0
    %411 = vmatmul.mubr.bf16.gmra.mxu0 %v261
    %v412 = vpop.f32.mrf.mxu0
    %v413 = vadd.f32 0.0, %v412
    %v414 = vpop.f32.mrf.mxu0
    %v415 = vpop.f32.mrf.mxu0
    %v416 = vadd.f32 0.0, %v415
    %v417 = vpop.f32.mrf.mxu0
    %418 = vmatprep.mubr.bf16.mxu0 0
    %419 = vmatmul.mubr.bf16.gmra.mxu0 %v264
    %v420 = vpop.f32.mrf.mxu0
    %v421 = vadd.f32 0.0, %v420
    %v422 = vpop.f32.mrf.mxu0
    %v423 = vpop.f32.mrf.mxu0
    %v424 = vadd.f32 0.0, %v423
    %v425 = vpop.f32.mrf.mxu0
    %426 = vmatprep.mubr.bf16.mxu0 0
    %427 = vmatmul.mubr.bf16.gmra.mxu0 %v267
    %v428 = vpop.f32.mrf.mxu0
    %v429 = vadd.f32 0.0, %v428
    %v430 = vpop.f32.mrf.mxu0
    %v431 = vpop.f32.mrf.mxu0
    %v432 = vadd.f32 0.0, %v431
    %v433 = vpop.f32.mrf.mxu0
    %434 = vmatprep.mubr.bf16.mxu0 0
    %435 = vmatmul.mubr.bf16.gmra.mxu0 %v270
    %v436 = vpop.f32.mrf.mxu0
    %v437 = vadd.f32 0.0, %v436
    %v438 = vpop.f32.mrf.mxu0
    %v439 = vpop.f32.mrf.mxu0
    %v440 = vadd.f32 0.0, %v439
    %v441 = vpop.f32.mrf.mxu0
    %442 = vmatprep.mubr.bf16.mxu0 0
    %443 = vmatmul.mubr.bf16.gmra.mxu0 %v273
    %v444 = vpop.f32.mrf.mxu0
    %v445 = vadd.f32 0.0, %v444
    %v446 = vpop.f32.mrf.mxu0
    %v447 = vpop.f32.mrf.mxu0
    %v448 = vadd.f32 0.0, %v447
    %v449 = vpop.f32.mrf.mxu0
    %450 = vmatprep.mubr.bf16.mxu0 0
    %451 = vmatmul.mubr.bf16.gmra.mxu0 %v276
    %v452 = vpop.f32.mrf.mxu0
    %v453 = vadd.f32 0.0, %v452
    %v454 = vpop.f32.mrf.mxu0
    %v455 = vpop.f32.mrf.mxu0
    %v456 = vadd.f32 0.0, %v455
    %v457 = vpop.f32.mrf.mxu0
    %458 = vmatprep.mubr.bf16.mxu0 0
    %459 = vmatmul.mubr.bf16.gmra.mxu0 %v279
    %v460 = vpop.f32.mrf.mxu0
    %v461 = vadd.f32 0.0, %v460
    %v462 = vpop.f32.mrf.mxu0
    %v463 = vpop.f32.mrf.mxu0
    %v464 = vadd.f32 0.0, %v463
    %v465 = vpop.f32.mrf.mxu0
    %466 = vmatprep.mubr.bf16.mxu0 0
    %467 = vmatmul.mubr.bf16.gmra.mxu0 %v282
    %v468 = vpop.f32.mrf.mxu0
    %v469 = vadd.f32 0.0, %v468
    %v470 = vpop.f32.mrf.mxu0
    %v471 = vpop.f32.mrf.mxu0
    %v472 = vadd.f32 0.0, %v471
    %v473 = vpop.f32.mrf.mxu0
    %474 = vmatprep.mubr.bf16.mxu0 0
    %475 = vmatmul.mubr.bf16.gmra.mxu0 %v285
    %v476 = vpop.f32.mrf.mxu0
    %v477 = vadd.f32 0.0, %v476
    %v478 = vpop.f32.mrf.mxu0
    %v479 = vpop.f32.mrf.mxu0
    %v480 = vadd.f32 0.0, %v479
    %v481 = vpop.f32.mrf.mxu0
    %482 = vmatprep.mubr.bf16.mxu0 0
    %483 = vmatmul.mubr.bf16.gmra.mxu0 %v288
    %v484 = vpop.f32.mrf.mxu0
    %v485 = vadd.f32 0.0, %v484
    %v486 = vpop.f32.mrf.mxu0
    %v487 = vpop.f32.mrf.mxu0
    %v488 = vadd.f32 0.0, %v487
    %v489 = vpop.f32.mrf.mxu0
    %490 = vmatprep.mubr.bf16.mxu0 0
    %491 = vmatmul.mubr.bf16.gmra.mxu0 %v291
    %v492 = vpop.f32.mrf.mxu0
    %v493 = vadd.f32 0.0, %v492
    %v494 = vpop.f32.mrf.mxu0
    %v495 = vpop.f32.mrf.mxu0
    %v496 = vadd.f32 0.0, %v495
    %v497 = vpop.f32.mrf.mxu0
    %498 = vmatprep.mubr.bf16.mxu0 0
    %499 = vmatmul.mubr.bf16.gmra.mxu0 %v294
    %v500 = vpop.f32.mrf.mxu0
    %v501 = vadd.f32 0.0, %v500
    %v502 = vpop.f32.mrf.mxu0
    %v503 = vpop.f32.mrf.mxu0
    %v504 = vadd.f32 0.0, %v503
    %v505 = vpop.f32.mrf.mxu0
    %506 = vmatprep.mubr.bf16.mxu0 0
    %507 = vmatmul.mubr.bf16.gmra.mxu0 %v297
    %v508 = vpop.f32.mrf.mxu0
    %v509 = vadd.f32 0.0, %v508
    %v510 = vpop.f32.mrf.mxu0
    %v511 = vpop.f32.mrf.mxu0
    %v512 = vadd.f32 0.0, %v511
    %v513 = vpop.f32.mrf.mxu0
    %514 = vmatprep.mubr.bf16.mxu0 0
    %515 = vmatmul.mubr.bf16.gmra.mxu0 %v300
    %v516 = vpop.f32.mrf.mxu0
    %v517 = vadd.f32 0.0, %v516
    %v518 = vpop.f32.mrf.mxu0
    %v519 = vpop.f32.mrf.mxu0
    %v520 = vadd.f32 0.0, %v519
    %v521 = vpop.f32.mrf.mxu0
    %522 = vmatprep.mubr.bf16.mxu0 0
    %523 = vmatmul.mubr.bf16.gmra.mxu0 %v303
    %v524 = vpop.f32.mrf.mxu0
    %v525 = vadd.f32 0.0, %v524
    %v526 = vpop.f32.mrf.mxu0
    %v527 = vpop.f32.mrf.mxu0
    %v528 = vadd.f32 0.0, %v527
    %v529 = vpop.f32.mrf.mxu0
    %530 = vmatprep.mubr.bf16.mxu0 0
    %531 = vmatmul.mubr.bf16.gmra.mxu0 %v306
    %v532 = vpop.f32.mrf.mxu0
    %v533 = vadd.f32 0.0, %v532
    %v534 = vpop.f32.mrf.mxu0
    %v535 = vpop.f32.mrf.mxu0
    %v536 = vadd.f32 0.0, %v535
    %v537 = vpop.f32.mrf.mxu0
    %538 = vmatprep.mubr.bf16.mxu0 0
    %539 = vmatmul.mubr.bf16.gmra.mxu0 %v309
    %v540 = vpop.f32.mrf.mxu0
    %v541 = vadd.f32 0.0, %v540
    %v542 = vpop.f32.mrf.mxu0
    %v543 = vpop.f32.mrf.mxu0
    %v544 = vadd.f32 0.0, %v543
    %v545 = vpop.f32.mrf.mxu0
    %546 = vmatprep.mubr.bf16.mxu0 0
    %547 = vmatmul.mubr.bf16.gmra.mxu0 %v312
    %v548 = vpop.f32.mrf.mxu0
    %v549 = vadd.f32 0.0, %v548
    %v550 = vpop.f32.mrf.mxu0
    %v551 = vpop.f32.mrf.mxu0
    %v552 = vadd.f32 0.0, %v551
    %v553 = vpop.f32.mrf.mxu0
    %554 = vmatprep.mubr.bf16.mxu0 0
    %555 = vmatmul.mubr.bf16.gmra.mxu0 %v315
    %v556 = vpop.f32.mrf.mxu0
    %v557 = vadd.f32 0.0, %v556
    %v558 = vpop.f32.mrf.mxu0
    %v559 = vpop.f32.mrf.mxu0
    %v560 = vadd.f32 0.0, %v559
    %v561 = vpop.f32.mrf.mxu0
    %562 = vmatprep.mubr.bf16.mxu0 0
    %563 = vmatmul.mubr.bf16.gmra.mxu0 %v318
    %v564 = vpop.f32.mrf.mxu0
    %v565 = vadd.f32 0.0, %v564
    %v566 = vpop.f32.mrf.mxu0
    %v567 = vpop.f32.mrf.mxu0
    %v568 = vadd.f32 0.0, %v567
    %v569 = vpop.f32.mrf.mxu0
    %570 = vmatprep.mubr.bf16.mxu0 0
    %571 = vmatmul.mubr.bf16.gmra.mxu0 %v321
    %v572 = vpop.f32.mrf.mxu0
    %v573 = vadd.f32 0.0, %v572
    %v574 = vpop.f32.mrf.mxu0
    %v575 = vpop.f32.mrf.mxu0
    %v576 = vadd.f32 0.0, %v575
    %v577 = vpop.f32.mrf.mxu0
    %578 = vmatprep.mubr.bf16.mxu0 0
    %579 = vmatmul.mubr.bf16.gmra.mxu0 %v324
    %v580 = vpop.f32.mrf.mxu0
    %v581 = vadd.f32 0.0, %v580
    %v582 = vpop.f32.mrf.mxu0
    %v583 = vpop.f32.mrf.mxu0
    %v584 = vadd.f32 0.0, %v583
    %v585 = vpop.f32.mrf.mxu0
    %586 = vmatprep.mubr.bf16.mxu0 0
    %587 = vmatmul.mubr.bf16.gmra.mxu0 %v327
    %v588 = vpop.f32.mrf.mxu0
    %v589 = vadd.f32 0.0, %v588
    %v590 = vpop.f32.mrf.mxu0
    %v591 = vpop.f32.mrf.mxu0
    %v592 = vadd.f32 0.0, %v591
    %v593 = vpop.f32.mrf.mxu0
    %594 = vmatprep.mubr.bf16.mxu0 0
    %595 = vmatmul.mubr.bf16.gmra.mxu0 %v330
    %v596 = vpop.f32.mrf.mxu0
    %v597 = vadd.f32 0.0, %v596
    %v598 = vpop.f32.mrf.mxu0
    %v599 = vpop.f32.mrf.mxu0
    %v600 = vadd.f32 0.0, %v599
    %v601 = vpop.f32.mrf.mxu0
    %602 = vmatprep.mubr.bf16.mxu0 0
    %603 = vmatmul.mubr.bf16.gmra.mxu0 %v333
    %v604 = vpop.f32.mrf.mxu0
    %v605 = vadd.f32 0.0, %v604
    %v606 = vpop.f32.mrf.mxu0
    %v607 = vpop.f32.mrf.mxu0
    %v608 = vadd.f32 0.0, %v607
    %v609 = vpop.f32.mrf.mxu0
    %610 = vmatprep.mubr.bf16.mxu0 0
    %611 = vmatmul.mubr.bf16.gmra.mxu0 %v336
    %v612 = vpop.f32.mrf.mxu0
    %v613 = vadd.f32 0.0, %v612
    %v614 = vpop.f32.mrf.mxu0
    %v615 = vpop.f32.mrf.mxu0
    %v616 = vadd.f32 0.0, %v615
    %v617 = vpop.f32.mrf.mxu0
    %618 = vmatprep.mubr.bf16.mxu0 0
    %619 = vmatmul.mubr.bf16.gmra.mxu0 %v339
    %v620 = vpop.f32.mrf.mxu0
    %v621 = vadd.f32 0.0, %v620
    %v622 = vpop.f32.mrf.mxu0
    %v623 = vpop.f32.mrf.mxu0
    %v624 = vadd.f32 0.0, %v623
    %v625 = vpop.f32.mrf.mxu0
    %626 = vmatprep.mubr.bf16.mxu0 0
    %627 = vmatmul.mubr.bf16.gmra.mxu0 %v342
    %v628 = vpop.f32.mrf.mxu0
    %v629 = vadd.f32 0.0, %v628
    %v630 = vpop.f32.mrf.mxu0
    %v631 = vpop.f32.mrf.mxu0
    %v632 = vadd.f32 0.0, %v631
    %v633 = vpop.f32.mrf.mxu0
    %634 = vmatprep.mubr.bf16.mxu0 0
    %635 = vmatmul.mubr.bf16.gmra.mxu0 %v345
    %v636 = vpop.f32.mrf.mxu0
    %v637 = vadd.f32 0.0, %v636
    %v638 = vpop.f32.mrf.mxu0
    %v639 = vpop.f32.mrf.mxu0
    %v640 = vadd.f32 0.0, %v639
    %v641 = vpop.f32.mrf.mxu0
    %642 = vdwg.mxu0
    %v643 = vld [vmem:[%s2] sm:$0x1]
    %v645 = vlaneseq
    %v646 = vshrl.u32 %v645, 7
    %v647 = vsub.s32 0, %v646
    %v648 = vrot.slane %v643, %v647
    %v650 = vmul.f32 %v389, %v648
    %v651 = vmul.f32 %v392, %v648
    %v652 = vmul.f32 %v397, %v648
    %v653 = vmul.f32 %v400, %v648
    %v654 = vmul.f32 %v405, %v648
    %v655 = vmul.f32 %v408, %v648
    %v656 = vmul.f32 %v413, %v648
    %v657 = vmul.f32 %v416, %v648
    %v658 = vmul.f32 %v421, %v648
    %v659 = vmul.f32 %v424, %v648
    %v660 = vmul.f32 %v429, %v648
    %v661 = vmul.f32 %v432, %v648
    %v662 = vmul.f32 %v437, %v648
    %v663 = vmul.f32 %v440, %v648
    %v664 = vmul.f32 %v445, %v648
    %v665 = vmul.f32 %v448, %v648
    %v666 = vmul.f32 %v453, %v648
    %v667 = vmul.f32 %v456, %v648
    %v668 = vmul.f32 %v461, %v648
    %v669 = vmul.f32 %v464, %v648
    %v670 = vmul.f32 %v469, %v648
    %v671 = vmul.f32 %v472, %v648
    %v672 = vmul.f32 %v477, %v648
    %v673 = vmul.f32 %v480, %v648
    %v674 = vmul.f32 %v485, %v648
    %v675 = vmul.f32 %v488, %v648
    %v676 = vmul.f32 %v493, %v648
    %v677 = vmul.f32 %v496, %v648
    %v678 = vmul.f32 %v501, %v648
    %v679 = vmul.f32 %v504, %v648
    %v680 = vmul.f32 %v509, %v648
    %v681 = vmul.f32 %v512, %v648
    %v682 = vmul.f32 %v517, %v648
    %v683 = vmul.f32 %v520, %v648
    %v684 = vmul.f32 %v525, %v648
    %v685 = vmul.f32 %v528, %v648
    %v686 = vmul.f32 %v533, %v648
    %v687 = vmul.f32 %v536, %v648
    %v688 = vmul.f32 %v541, %v648
    %v689 = vmul.f32 %v544, %v648
    %v690 = vmul.f32 %v549, %v648
    %v691 = vmul.f32 %v552, %v648
    %v692 = vmul.f32 %v557, %v648
    %v693 = vmul.f32 %v560, %v648
    %v694 = vmul.f32 %v565, %v648
    %v695 = vmul.f32 %v568, %v648
    %v696 = vmul.f32 %v573, %v648
    %v697 = vmul.f32 %v576, %v648
    %v698 = vmul.f32 %v581, %v648
    %v699 = vmul.f32 %v584, %v648
    %v700 = vmul.f32 %v589, %v648
    %v701 = vmul.f32 %v592, %v648
    %v702 = vmul.f32 %v597, %v648
    %v703 = vmul.f32 %v600, %v648
    %v704 = vmul.f32 %v605, %v648
    %v705 = vmul.f32 %v608, %v648
    %v706 = vmul.f32 %v613, %v648
    %v707 = vmul.f32 %v616, %v648
    %v708 = vmul.f32 %v621, %v648
    %v709 = vmul.f32 %v624, %v648
    %v710 = vmul.f32 %v629, %v648
    %v711 = vmul.f32 %v632, %v648
    %v712 = vmul.f32 %v637, %v648
    %v713 = vmul.f32 %v640, %v648
    %v714 = vld [vmem:[%s3] sm:$0x1]
    %v716 = vlaneseq
    %v717 = vshrl.u32 %v716, 7
    %v718 = vsub.s32 0, %v717
    %v719 = vrot.slane %v714, %v718
    %v721 = vadd.f32 %v650, %v719
    %v722 = vadd.f32 %v651, %v719
    %v723 = vadd.f32 %v652, %v719
    %v724 = vadd.f32 %v653, %v719
    %v725 = vadd.f32 %v654, %v719
    %v726 = vadd.f32 %v655, %v719
    %v727 = vadd.f32 %v656, %v719
    %v728 = vadd.f32 %v657, %v719
    %v729 = vadd.f32 %v658, %v719
    %v730 = vadd.f32 %v659, %v719
    %v731 = vadd.f32 %v660, %v719
    %v732 = vadd.f32 %v661, %v719
    %v733 = vadd.f32 %v662, %v719
    %v734 = vadd.f32 %v663, %v719
    %v735 = vadd.f32 %v664, %v719
    %v736 = vadd.f32 %v665, %v719
    %v737 = vadd.f32 %v666, %v719
    %v738 = vadd.f32 %v667, %v719
    %v739 = vadd.f32 %v668, %v719
    %v740 = vadd.f32 %v669, %v719
    %v741 = vadd.f32 %v670, %v719
    %v742 = vadd.f32 %v671, %v719
    %v743 = vadd.f32 %v672, %v719
    %v744 = vadd.f32 %v673, %v719
    %v745 = vadd.f32 %v674, %v719
    %v746 = vadd.f32 %v675, %v719
    %v747 = vadd.f32 %v676, %v719
    %v748 = vadd.f32 %v677, %v719
    %v749 = vadd.f32 %v678, %v719
    %v750 = vadd.f32 %v679, %v719
    %v751 = vadd.f32 %v680, %v719
    %v752 = vadd.f32 %v681, %v719
    %v753 = vadd.f32 %v682, %v719
    %v754 = vadd.f32 %v683, %v719
    %v755 = vadd.f32 %v684, %v719
    %v756 = vadd.f32 %v685, %v719
    %v757 = vadd.f32 %v686, %v719
    %v758 = vadd.f32 %v687, %v719
    %v759 = vadd.f32 %v688, %v719
    %v760 = vadd.f32 %v689, %v719
    %v761 = vadd.f32 %v690, %v719
    %v762 = vadd.f32 %v691, %v719
    %v763 = vadd.f32 %v692, %v719
    %v764 = vadd.f32 %v693, %v719
    %v765 = vadd.f32 %v694, %v719
    %v766 = vadd.f32 %v695, %v719
    %v767 = vadd.f32 %v696, %v719
    %v768 = vadd.f32 %v697, %v719
    %v769 = vadd.f32 %v698, %v719
    %v770 = vadd.f32 %v699, %v719
    %v771 = vadd.f32 %v700, %v719
    %v772 = vadd.f32 %v701, %v719
    %v773 = vadd.f32 %v702, %v719
    %v774 = vadd.f32 %v703, %v719
    %v775 = vadd.f32 %v704, %v719
    %v776 = vadd.f32 %v705, %v719
    %v777 = vadd.f32 %v706, %v719
    %v778 = vadd.f32 %v707, %v719
    %v779 = vadd.f32 %v708, %v719
    %v780 = vadd.f32 %v709, %v719
    %v781 = vadd.f32 %v710, %v719
    %v782 = vadd.f32 %v711, %v719
    %v783 = vadd.f32 %v712, %v719
    %v784 = vadd.f32 %v713, %v719
    %v785 = vmax.f32 %v721, 0.0
    %v786 = vmax.f32 %v722, 0.0
    %v787 = vmax.f32 %v723, 0.0
    %v788 = vmax.f32 %v724, 0.0
    %v789 = vmax.f32 %v725, 0.0
    %v790 = vmax.f32 %v726, 0.0
    %v791 = vmax.f32 %v727, 0.0
    %v792 = vmax.f32 %v728, 0.0
    %v793 = vmax.f32 %v729, 0.0
    %v794 = vmax.f32 %v730, 0.0
    %v795 = vmax.f32 %v731, 0.0
    %v796 = vmax.f32 %v732, 0.0
    %v797 = vmax.f32 %v733, 0.0
    %v798 = vmax.f32 %v734, 0.0
    %v799 = vmax.f32 %v735, 0.0
    %v800 = vmax.f32 %v736, 0.0
    %v801 = vmax.f32 %v737, 0.0
    %v802 = vmax.f32 %v738, 0.0
    %v803 = vmax.f32 %v739, 0.0
    %v804 = vmax.f32 %v740, 0.0
    %v805 = vmax.f32 %v741, 0.0
    %v806 = vmax.f32 %v742, 0.0
    %v807 = vmax.f32 %v743, 0.0
    %v808 = vmax.f32 %v744, 0.0
    %v809 = vmax.f32 %v745, 0.0
    %v810 = vmax.f32 %v746, 0.0
    %v811 = vmax.f32 %v747, 0.0
    %v812 = vmax.f32 %v748, 0.0
    %v813 = vmax.f32 %v749, 0.0
    %v814 = vmax.f32 %v750, 0.0
    %v815 = vmax.f32 %v751, 0.0
    %v816 = vmax.f32 %v752, 0.0
    %v817 = vmax.f32 %v753, 0.0
    %v818 = vmax.f32 %v754, 0.0
    %v819 = vmax.f32 %v755, 0.0
    %v820 = vmax.f32 %v756, 0.0
    %v821 = vmax.f32 %v757, 0.0
    %v822 = vmax.f32 %v758, 0.0
    %v823 = vmax.f32 %v759, 0.0
    %v824 = vmax.f32 %v760, 0.0
    %v825 = vmax.f32 %v761, 0.0
    %v826 = vmax.f32 %v762, 0.0
    %v827 = vmax.f32 %v763, 0.0
    %v828 = vmax.f32 %v764, 0.0
    %v829 = vmax.f32 %v765, 0.0
    %v830 = vmax.f32 %v766, 0.0
    %v831 = vmax.f32 %v767, 0.0
    %v832 = vmax.f32 %v768, 0.0
    %v833 = vmax.f32 %v769, 0.0
    %v834 = vmax.f32 %v770, 0.0
    %v835 = vmax.f32 %v771, 0.0
    %v836 = vmax.f32 %v772, 0.0
    %v837 = vmax.f32 %v773, 0.0
    %v838 = vmax.f32 %v774, 0.0
    %v839 = vmax.f32 %v775, 0.0
    %v840 = vmax.f32 %v776, 0.0
    %v841 = vmax.f32 %v777, 0.0
    %v842 = vmax.f32 %v778, 0.0
    %v843 = vmax.f32 %v779, 0.0
    %v844 = vmax.f32 %v780, 0.0
    %v845 = vmax.f32 %v781, 0.0
    %v846 = vmax.f32 %v782, 0.0
    %v847 = vmax.f32 %v783, 0.0
    %v848 = vmax.f32 %v784, 0.0
    %849 = vst [vmem:[#allocation2] sm:$0xff] %v785
    %850 = vst [vmem:[#allocation2 + $0x8] sm:$0xff] %v786
    %851 = vst [vmem:[#allocation2 + $0x10] sm:$0xff] %v787
    %852 = vst [vmem:[#allocation2 + $0x18] sm:$0xff] %v788
    %853 = vst [vmem:[#allocation2 + $0x20] sm:$0xff] %v789
    %854 = vst [vmem:[#allocation2 + $0x28] sm:$0xff] %v790
    %855 = vst [vmem:[#allocation2 + $0x30] sm:$0xff] %v791
    %856 = vst [vmem:[#allocation2 + $0x38] sm:$0xff] %v792
    %857 = vst [vmem:[#allocation2 + $0x40] sm:$0xff] %v793
    %858 = vst [vmem:[#allocation2 + $0x48] sm:$0xff] %v794
    %859 = vst [vmem:[#allocation2 + $0x50] sm:$0xff] %v795
    %860 = vst [vmem:[#allocation2 + $0x58] sm:$0xff] %v796
    %861 = vst [vmem:[#allocation2 + $0x60] sm:$0xff] %v797
    %862 = vst [vmem:[#allocation2 + $0x68] sm:$0xff] %v798
    %863 = vst [vmem:[#allocation2 + $0x70] sm:$0xff] %v799
    %864 = vst [vmem:[#allocation2 + $0x78] sm:$0xff] %v800
    %865 = vst [vmem:[#allocation2 + $0x80] sm:$0xff] %v801
    %866 = vst [vmem:[#allocation2 + $0x88] sm:$0xff] %v802
    %867 = vst [vmem:[#allocation2 + $0x90] sm:$0xff] %v803
    %868 = vst [vmem:[#allocation2 + $0x98] sm:$0xff] %v804
    %869 = vst [vmem:[#allocation2 + $0xa0] sm:$0xff] %v805
    %870 = vst [vmem:[#allocation2 + $0xa8] sm:$0xff] %v806
    %871 = vst [vmem:[#allocation2 + $0xb0] sm:$0xff] %v807
    %872 = vst [vmem:[#allocation2 + $0xb8] sm:$0xff] %v808
    %873 = vst [vmem:[#allocation2 + $0xc0] sm:$0xff] %v809
    %874 = vst [vmem:[#allocation2 + $0xc8] sm:$0xff] %v810
    %875 = vst [vmem:[#allocation2 + $0xd0] sm:$0xff] %v811
    %876 = vst [vmem:[#allocation2 + $0xd8] sm:$0xff] %v812
    %877 = vst [vmem:[#allocation2 + $0xe0] sm:$0xff] %v813
    %878 = vst [vmem:[#allocation2 + $0xe8] sm:$0xff] %v814
    %879 = vst [vmem:[#allocation2 + $0xf0] sm:$0xff] %v815
    %880 = vst [vmem:[#allocation2 + $0xf8] sm:$0xff] %v816
    %881 = vst [vmem:[#allocation2 + $0x100] sm:$0xff] %v817
    %882 = vst [vmem:[#allocation2 + $0x108] sm:$0xff] %v818
    %883 = vst [vmem:[#allocation2 + $0x110] sm:$0xff] %v819
    %884 = vst [vmem:[#allocation2 + $0x118] sm:$0xff] %v820
    %885 = vst [vmem:[#allocation2 + $0x120] sm:$0xff] %v821
    %886 = vst [vmem:[#allocation2 + $0x128] sm:$0xff] %v822
    %887 = vst [vmem:[#allocation2 + $0x130] sm:$0xff] %v823
    %888 = vst [vmem:[#allocation2 + $0x138] sm:$0xff] %v824
    %889 = vst [vmem:[#allocation2 + $0x140] sm:$0xff] %v825
    %890 = vst [vmem:[#allocation2 + $0x148] sm:$0xff] %v826
    %891 = vst [vmem:[#allocation2 + $0x150] sm:$0xff] %v827
    %892 = vst [vmem:[#allocation2 + $0x158] sm:$0xff] %v828
    %893 = vst [vmem:[#allocation2 + $0x160] sm:$0xff] %v829
    %894 = vst [vmem:[#allocation2 + $0x168] sm:$0xff] %v830
    %895 = vst [vmem:[#allocation2 + $0x170] sm:$0xff] %v831
    %896 = vst [vmem:[#allocation2 + $0x178] sm:$0xff] %v832
    %897 = vst [vmem:[#allocation2 + $0x180] sm:$0xff] %v833
    %898 = vst [vmem:[#allocation2 + $0x188] sm:$0xff] %v834
    %899 = vst [vmem:[#allocation2 + $0x190] sm:$0xff] %v835
    %900 = vst [vmem:[#allocation2 + $0x198] sm:$0xff] %v836
    %901 = vst [vmem:[#allocation2 + $0x1a0] sm:$0xff] %v837
    %902 = vst [vmem:[#allocation2 + $0x1a8] sm:$0xff] %v838
    %903 = vst [vmem:[#allocation2 + $0x1b0] sm:$0xff] %v839
    %904 = vst [vmem:[#allocation2 + $0x1b8] sm:$0xff] %v840
    %905 = vst [vmem:[#allocation2 + $0x1c0] sm:$0xff] %v841
    %906 = vst [vmem:[#allocation2 + $0x1c8] sm:$0xff] %v842
    %907 = vst [vmem:[#allocation2 + $0x1d0] sm:$0xff] %v843
    %908 = vst [vmem:[#allocation2 + $0x1d8] sm:$0xff] %v844
    %909 = vst [vmem:[#allocation2 + $0x1e0] sm:$0xff] %v845
    %910 = vst [vmem:[#allocation2 + $0x1e8] sm:$0xff] %v846
    %911 = vst [vmem:[#allocation2 + $0x1f0] sm:$0xff] %v847
    %912 = vst [vmem:[#allocation2 + $0x1f8] sm:$0xff] %v848
    // Predicated region
    $region18: #{tpu_custom_call.1} parent=1 // pred_check
      _
    $region19: #{tpu_custom_call.1} parent=1 // pred_check_branch
      %914 = sbr.rel (0) target = $region21
    $region20: #{tpu_custom_call.1} parent=1 // pred_region
      %s916 = ssub.s32 8192, 8192
      %917 = vsyncadd [#allocation3], %s916
      %s918 = sshll.u32 [#allocation2], 4
      %s919 = int_to_ptr.vmem [resolvable:$true] %s918
      %924 = dma.vmem_to_hbm [thread:$0]  %s919, 8192, %s4, [#allocation3], 128, 128, 8
    $region21: #{tpu_custom_call.1} parent=1 // pred_fallthru
      _
    // Predicated region
    $region22: #{tpu_custom_call.1} parent=1 // pred_check
      _
    $region23: #{tpu_custom_call.1} parent=1 // pred_check_branch
      %926 = sbr.rel (0) target = $region25
    $region24: #{tpu_custom_call.1} parent=1 // pred_region
      %927 = dma.done [#allocation3], 8192
    $region25: #{tpu_custom_call.1} parent=1 // pred_fallthru
      _
    %928 = vsyncpa [#allocation3], 1

</llo_original>
